<compile_context>
chip_gen: v7x
topology: tpu7x:2x2x1
jax: 0.10.0
libtpu: 0.0.40
codegen_flags: <defaults>
</compile_context>

<pallas_src>
import functools

import jax
import jax.numpy as jnp
from jax.experimental import pallas as pl
from jax.experimental.pallas import tpu as pltpu


def _dynamics_seq_kernel(x_ref, done_ref, wx_ref, wh_ref, b_ref, h0_ref,
                         out_ref, h_scr, xp_scr, *, tt, batch):
    i = pl.program_id(0)

    # Load the caller's initial hidden state on the first grid step; it is
    # carried in f32 VMEM scratch for the rest of the rollout.
    @pl.when(i == 0)
    def _():
        h_scr[...] = h0_ref[...]

    # Hoisted x-projection for the whole time block: one (tt*batch, D_in)
    # @ (D_in, H) MXU matmul, bias folded in.  Not on the serial path.
    xp_scr[...] = (
        jnp.dot(x_ref[...], wx_ref[...], preferred_element_type=jnp.float32)
        + b_ref[...])

    wh = wh_ref[...]                      # bf16, VMEM-resident weight
    h = h_scr[...]                        # f32 carried state

    # Static (fully unrolled) inner loop over the tt timesteps of this block.
    for s in range(tt):
        r0 = s * batch
        # masked_fill_initial_state: reset h to the initial state (zeros)
        # where the episode terminated (done is a 0/1 float mask).
        done_s = done_ref[r0:r0 + batch, :]            # (batch, 1) f32
        h_in = h * (1.0 - done_s)
        # forward: h' = tanh(h @ Wh + (x @ Wx + b)) — single bf16 MXU dot.
        acc = jnp.dot(h_in.astype(jnp.bfloat16), wh,
                      preferred_element_type=jnp.float32)
        h = jnp.tanh(acc + xp_scr[r0:r0 + batch, :])
        out_ref[r0:r0 + batch, :] = h.astype(out_ref.dtype)

    h_scr[...] = h


def dynamics_rollout(x_seq, done_seq, h0, wx, wh, b, *, tt=4):
    """Run T recurrent dynamics steps; returns all hidden states [T, B, H]."""
    T, B, D_in = x_seq.shape
    H = h0.shape[-1]
    assert wx.shape == (D_in, H) and wh.shape == (H, H) and b.shape == (1, H)
    assert done_seq.shape == (T, B, 1) and h0.shape == (B, H)
    # Layout requirements (lane-dense blocks, full bf16 sublane packing).
    assert D_in % 128 == 0 and H % 128 == 0, "feature dims must be lane-dense"
    assert B % 16 == 0, "batch must be a multiple of 16 (bf16 sublanes)"
    tt = min(tt, T)
    assert T % tt == 0, "T must be a multiple of the time-block size"

    # 2-D slabs so every Pallas block is a plain rectangle (no reshapes in
    # the kernel body).
    x2 = x_seq.reshape(T * B, D_in).astype(jnp.bfloat16)
    done2 = done_seq.reshape(T * B, 1).astype(jnp.float32)
    wx_bf = wx.astype(jnp.bfloat16)
    wh_bf = wh.astype(jnp.bfloat16)

    kernel = functools.partial(_dynamics_seq_kernel, tt=tt, batch=B)
    out2 = pl.pallas_call(
        kernel,
        out_shape=jax.ShapeDtypeStruct((T * B, H), jnp.bfloat16),
        grid=(T // tt,),
        in_specs=[
            pl.BlockSpec((tt * B, D_in), lambda i: (i, 0)),   # x   (per block)
            pl.BlockSpec((tt * B, 1), lambda i: (i, 0)),      # done (per block)
            pl.BlockSpec((D_in, H), lambda i: (0, 0)),        # Wx  (resident)
            pl.BlockSpec((H, H), lambda i: (0, 0)),           # Wh  (resident)
            pl.BlockSpec((1, H), lambda i: (0, 0)),           # b   (resident)
            pl.BlockSpec((B, H), lambda i: (0, 0)),           # h0  (resident)
        ],
        out_specs=pl.BlockSpec((tt * B, H), lambda i: (i, 0)),
        scratch_shapes=[
            pltpu.VMEM((B, H), jnp.float32),        # carried hidden state
            pltpu.VMEM((tt * B, H), jnp.float32),   # block x-projection
        ],
        compiler_params=pltpu.CompilerParams(
            dimension_semantics=("arbitrary",)),    # time axis carries state
    )(x2, done2, wx_bf, wh_bf, b.astype(jnp.float32), h0.astype(jnp.float32))

    return out2.reshape(T, B, H)


def initial_state(batch_size, hidden):
    return jnp.zeros((batch_size, hidden), dtype=jnp.float32)


if __name__ == "__main__":
    T, B, D_IN, H = 16, 16, 128, 128   # lane-dense features, B multiple of 16

    key = jax.random.PRNGKey(0)
    k_x, k_h, k_wx, k_wh, k_b, k_d = jax.random.split(key, 6)

    x_seq = jax.random.normal(k_x, (T, B, D_IN), dtype=jnp.float32)
    h0 = jax.random.normal(k_h, (B, H), dtype=jnp.float32)
    # deterministic synthetic parameters (no checkpoint loading)
    wx = 0.1 * jax.random.normal(k_wx, (D_IN, H), dtype=jnp.float32)
    wh = 0.1 * jax.random.normal(k_wh, (H, H), dtype=jnp.float32)
    b = 0.01 * jax.random.normal(k_b, (1, H), dtype=jnp.float32)
    done_seq = (jax.random.uniform(k_d, (T, B, 1)) > 0.7).astype(jnp.float32)

    out = dynamics_rollout(x_seq, done_seq, h0, wx, wh, b, tt=4)
    out = jax.block_until_ready(out)

    # Pure-JAX reference mirroring the kernel math (hoisted x-projection,
    # bf16 matmul operands, f32 accumulation / carried state).
    wx_bf = wx.astype(jnp.bfloat16)
    wh_bf = wh.astype(jnp.bfloat16)
    xp = jnp.dot(x_seq.astype(jnp.bfloat16).reshape(T * B, D_IN), wx_bf,
                 preferred_element_type=jnp.float32).reshape(T, B, H) + b
    h_state = h0
    refs = []
    for t in range(T):
        h_in = h_state * (1.0 - done_seq[t])
        h_state = jnp.tanh(
            jnp.dot(h_in.astype(jnp.bfloat16), wh_bf,
                    preferred_element_type=jnp.float32) + xp[t])
        refs.append(h_state)
    ref = jnp.stack(refs, axis=0)

    assert out.shape == (T, B, H)
    # Output is bf16 (halves HBM writeback); compare with bf16-level tolerance.
    assert jnp.allclose(out.astype(jnp.float32), ref, atol=2e-2, rtol=2e-2), \
        "mismatch vs reference"

    print("KERNEL_OK")
</pallas_src>

<mosaic_0001>
module attributes {stable_mosaic.version = 11 : i64} {
  func.func @_dynamics_seq_kernel(%arg0: i32, %arg1: memref<64x128xbf16, #tpu.memory_space<vmem>>, %arg2: memref<64x1xf32, #tpu.memory_space<vmem>>, %arg3: memref<128x128xbf16, #tpu.memory_space<vmem>>, %arg4: memref<128x128xbf16, #tpu.memory_space<vmem>>, %arg5: memref<1x128xf32, #tpu.memory_space<vmem>>, %arg6: memref<16x128xf32, #tpu.memory_space<vmem>>, %arg7: memref<64x128xbf16, #tpu.memory_space<vmem>>, %arg8: memref<16x128xf32, #tpu.memory_space<vmem>>, %arg9: memref<64x128xf32, #tpu.memory_space<vmem>>) attributes {dimension_semantics = [#tpu.dimension_semantics<arbitrary>], iteration_bounds = array<i64: 4>, scalar_prefetch = 0 : i64, scratch_operands = 2 : i64, tpu.core_type = #tpu.core_type<tc>, window_params = [{transform_indices = @transform_0, window_bounds = array<i64: 64, 128>}, {transform_indices = @transform_1, window_bounds = array<i64: 64, 1>}, {pipeline_mode = #tpu.pipeline_mode<synchronous>, transform_indices = @transform_2, window_bounds = array<i64: 128, 128>}, {pipeline_mode = #tpu.pipeline_mode<synchronous>, transform_indices = @transform_3, window_bounds = array<i64: 128, 128>}, {pipeline_mode = #tpu.pipeline_mode<synchronous>, transform_indices = @transform_4, window_bounds = array<i64: 1, 128>}, {pipeline_mode = #tpu.pipeline_mode<synchronous>, transform_indices = @transform_5, window_bounds = array<i64: 16, 128>}, {transform_indices = @transform_6, window_bounds = array<i64: 64, 128>}]} {
    %c0_i32 = arith.constant 0 : i32
    %0 = arith.cmpi eq, %arg0, %c0_i32 : i32
    %1 = arith.extui %0 : i1 to i32
    %c0_i32_0 = arith.constant 0 : i32
    %2 = arith.cmpi ne, %1, %c0_i32_0 : i32
    scf.if %2 {
      %c0_43 = arith.constant 0 : index
      %c0_44 = arith.constant 0 : index
      %61 = vector.load %arg6[%c0_43, %c0_44] : memref<16x128xf32, #tpu.memory_space<vmem>>, vector<16x128xf32>
      %c0_45 = arith.constant 0 : index
      %c0_46 = arith.constant 0 : index
      %62 = vector.load %arg8[%c0_45, %c0_46] : memref<16x128xf32, #tpu.memory_space<vmem>>, vector<16x128xf32>
      tpu.vector_store %arg8[%c0_45, %c0_46], %61 {strides = array<i32>} : memref<16x128xf32, #tpu.memory_space<vmem>>, vector<16x128xf32>,
    } else {
    }
    %c0 = arith.constant 0 : index
    %c0_1 = arith.constant 0 : index
    %3 = vector.load %arg1[%c0, %c0_1] : memref<64x128xbf16, #tpu.memory_space<vmem>>, vector<64x128xbf16>
    %c0_2 = arith.constant 0 : index
    %c0_3 = arith.constant 0 : index
    %4 = vector.load %arg3[%c0_2, %c0_3] : memref<128x128xbf16, #tpu.memory_space<vmem>>, vector<128x128xbf16>
    %cst = arith.constant dense<0.000000e+00> : vector<64x128xf32>
    %5 = tpu.matmul %3, %4, %cst {dimension_numbers = #tpu.dot_dimension_numbers<[1], [0], [0], [1], [0, 0, 1, 1], [], []>} : vector<64x128xbf16>, vector<128x128xbf16>, vector<64x128xf32> -> vector<64x128xf32>
    %c0_4 = arith.constant 0 : index
    %c0_5 = arith.constant 0 : index
    %6 = vector.load %arg5[%c0_4, %c0_5] : memref<1x128xf32, #tpu.memory_space<vmem>>, vector<1x128xf32>
    %7 = vector.broadcast %6 : vector<1x128xf32> to vector<64x128xf32>
    %8 = arith.addf %5, %7 : vector<64x128xf32>
    %c0_6 = arith.constant 0 : index
    %c0_7 = arith.constant 0 : index
    %9 = vector.load %arg9[%c0_6, %c0_7] : memref<64x128xf32, #tpu.memory_space<vmem>>, vector<64x128xf32>
    tpu.vector_store %arg9[%c0_6, %c0_7], %8 {strides = array<i32>} : memref<64x128xf32, #tpu.memory_space<vmem>>, vector<64x128xf32>,
    %c0_8 = arith.constant 0 : index
    %c0_9 = arith.constant 0 : index
    %10 = vector.load %arg4[%c0_8, %c0_9] : memref<128x128xbf16, #tpu.memory_space<vmem>>, vector<128x128xbf16>
    %c0_10 = arith.constant 0 : index
    %c0_11 = arith.constant 0 : index
    %11 = vector.load %arg8[%c0_10, %c0_11] : memref<16x128xf32, #tpu.memory_space<vmem>>, vector<16x128xf32>
    %c0_12 = arith.constant 0 : index
    %c0_13 = arith.constant 0 : index
    %12 = vector.load %arg2[%c0_12, %c0_13] : memref<64x1xf32, #tpu.memory_space<vmem>>, vector<16x1xf32>
    %cst_14 = arith.constant 1.000000e+00 : f32
    %13 = vector.broadcast %cst_14 : f32 to vector<16x1xf32>
    %14 = arith.subf %13, %12 : vector<16x1xf32>
    %15 = vector.broadcast %14 : vector<16x1xf32> to vector<16x128xf32>
    %16 = arith.mulf %11, %15 : vector<16x128xf32>
    %17 = arith.truncf %16 : vector<16x128xf32> to vector<16x128xbf16>
    %cst_15 = arith.constant dense<0.000000e+00> : vector<16x128xf32>
    %18 = tpu.matmul %17, %10, %cst_15 {dimension_numbers = #tpu.dot_dimension_numbers<[1], [0], [0], [1], [0, 0, 1, 1], [], []>} : vector<16x128xbf16>, vector<128x128xbf16>, vector<16x128xf32> -> vector<16x128xf32>
    %c0_16 = arith.constant 0 : index
    %c0_17 = arith.constant 0 : index
    %19 = vector.load %arg9[%c0_16, %c0_17] : memref<64x128xf32, #tpu.memory_space<vmem>>, vector<16x128xf32>
    %20 = arith.addf %18, %19 : vector<16x128xf32>
    %21 = math.tanh %20 : vector<16x128xf32>
    %22 = arith.truncf %21 : vector<16x128xf32> to vector<16x128xbf16>
    %c0_18 = arith.constant 0 : index
    %c0_19 = arith.constant 0 : index
    %23 = vector.load %arg7[%c0_18, %c0_19] : memref<64x128xbf16, #tpu.memory_space<vmem>>, vector<16x128xbf16>
    tpu.vector_store %arg7[%c0_18, %c0_19], %22 {strides = array<i32>} : memref<64x128xbf16, #tpu.memory_space<vmem>>, vector<16x128xbf16>,
    %c16 = arith.constant 16 : index
    %c0_20 = arith.constant 0 : index
    %24 = vector.load %arg2[%c16, %c0_20] : memref<64x1xf32, #tpu.memory_space<vmem>>, vector<16x1xf32>
    %cst_21 = arith.constant 1.000000e+00 : f32
    %25 = vector.broadcast %cst_21 : f32 to vector<16x1xf32>
    %26 = arith.subf %25, %24 : vector<16x1xf32>
    %27 = vector.broadcast %26 : vector<16x1xf32> to vector<16x128xf32>
    %28 = arith.mulf %21, %27 : vector<16x128xf32>
    %29 = arith.truncf %28 : vector<16x128xf32> to vector<16x128xbf16>
    %cst_22 = arith.constant dense<0.000000e+00> : vector<16x128xf32>
    %30 = tpu.matmul %29, %10, %cst_22 {dimension_numbers = #tpu.dot_dimension_numbers<[1], [0], [0], [1], [0, 0, 1, 1], [], []>} : vector<16x128xbf16>, vector<128x128xbf16>, vector<16x128xf32> -> vector<16x128xf32>
    %c16_23 = arith.constant 16 : index
    %c0_24 = arith.constant 0 : index
    %31 = vector.load %arg9[%c16_23, %c0_24] : memref<64x128xf32, #tpu.memory_space<vmem>>, vector<16x128xf32>
    %32 = arith.addf %30, %31 : vector<16x128xf32>
    %33 = math.tanh %32 : vector<16x128xf32>
    %34 = arith.truncf %33 : vector<16x128xf32> to vector<16x128xbf16>
    %c16_25 = arith.constant 16 : index
    %c0_26 = arith.constant 0 : index
    %35 = vector.load %arg7[%c16_25, %c0_26] : memref<64x128xbf16, #tpu.memory_space<vmem>>, vector<16x128xbf16>
    tpu.vector_store %arg7[%c16_25, %c0_26], %34 {strides = array<i32>} : memref<64x128xbf16, #tpu.memory_space<vmem>>, vector<16x128xbf16>,
    %c32 = arith.constant 32 : index
    %c0_27 = arith.constant 0 : index
    %36 = vector.load %arg2[%c32, %c0_27] : memref<64x1xf32, #tpu.memory_space<vmem>>, vector<16x1xf32>
    %cst_28 = arith.constant 1.000000e+00 : f32
    %37 = vector.broadcast %cst_28 : f32 to vector<16x1xf32>
    %38 = arith.subf %37, %36 : vector<16x1xf32>
    %39 = vector.broadcast %38 : vector<16x1xf32> to vector<16x128xf32>
    %40 = arith.mulf %33, %39 : vector<16x128xf32>
    %41 = arith.truncf %40 : vector<16x128xf32> to vector<16x128xbf16>
    %cst_29 = arith.constant dense<0.000000e+00> : vector<16x128xf32>
    %42 = tpu.matmul %41, %10, %cst_29 {dimension_numbers = #tpu.dot_dimension_numbers<[1], [0], [0], [1], [0, 0, 1, 1], [], []>} : vector<16x128xbf16>, vector<128x128xbf16>, vector<16x128xf32> -> vector<16x128xf32>
    %c32_30 = arith.constant 32 : index
    %c0_31 = arith.constant 0 : index
    %43 = vector.load %arg9[%c32_30, %c0_31] : memref<64x128xf32, #tpu.memory_space<vmem>>, vector<16x128xf32>
    %44 = arith.addf %42, %43 : vector<16x128xf32>
    %45 = math.tanh %44 : vector<16x128xf32>
    %46 = arith.truncf %45 : vector<16x128xf32> to vector<16x128xbf16>
    %c32_32 = arith.constant 32 : index
    %c0_33 = arith.constant 0 : index
    %47 = vector.load %arg7[%c32_32, %c0_33] : memref<64x128xbf16, #tpu.memory_space<vmem>>, vector<16x128xbf16>
    tpu.vector_store %arg7[%c32_32, %c0_33], %46 {strides = array<i32>} : memref<64x128xbf16, #tpu.memory_space<vmem>>, vector<16x128xbf16>,
    %c48 = arith.constant 48 : index
    %c0_34 = arith.constant 0 : index
    %48 = vector.load %arg2[%c48, %c0_34] : memref<64x1xf32, #tpu.memory_space<vmem>>, vector<16x1xf32>
    %cst_35 = arith.constant 1.000000e+00 : f32
    %49 = vector.broadcast %cst_35 : f32 to vector<16x1xf32>
    %50 = arith.subf %49, %48 : vector<16x1xf32>
    %51 = vector.broadcast %50 : vector<16x1xf32> to vector<16x128xf32>
    %52 = arith.mulf %45, %51 : vector<16x128xf32>
    %53 = arith.truncf %52 : vector<16x128xf32> to vector<16x128xbf16>
    %cst_36 = arith.constant dense<0.000000e+00> : vector<16x128xf32>
    %54 = tpu.matmul %53, %10, %cst_36 {dimension_numbers = #tpu.dot_dimension_numbers<[1], [0], [0], [1], [0, 0, 1, 1], [], []>} : vector<16x128xbf16>, vector<128x128xbf16>, vector<16x128xf32> -> vector<16x128xf32>
    %c48_37 = arith.constant 48 : index
    %c0_38 = arith.constant 0 : index
    %55 = vector.load %arg9[%c48_37, %c0_38] : memref<64x128xf32, #tpu.memory_space<vmem>>, vector<16x128xf32>
    %56 = arith.addf %54, %55 : vector<16x128xf32>
    %57 = math.tanh %56 : vector<16x128xf32>
    %58 = arith.truncf %57 : vector<16x128xf32> to vector<16x128xbf16>
    %c48_39 = arith.constant 48 : index
    %c0_40 = arith.constant 0 : index
    %59 = vector.load %arg7[%c48_39, %c0_40] : memref<64x128xbf16, #tpu.memory_space<vmem>>, vector<16x128xbf16>
    tpu.vector_store %arg7[%c48_39, %c0_40], %58 {strides = array<i32>} : memref<64x128xbf16, #tpu.memory_space<vmem>>, vector<16x128xbf16>,
    %c0_41 = arith.constant 0 : index
    %c0_42 = arith.constant 0 : index
    %60 = vector.load %arg8[%c0_41, %c0_42] : memref<16x128xf32, #tpu.memory_space<vmem>>, vector<16x128xf32>
    tpu.vector_store %arg8[%c0_41, %c0_42], %57 {strides = array<i32>} : memref<16x128xf32, #tpu.memory_space<vmem>>, vector<16x128xf32>,
    return
  }
  func.func @transform_0(%arg0: i32) -> (i32, i32) {
    %c0_i32 = arith.constant 0 : i32
    %c0_i32_0 = arith.constant 0 : i32
    return %arg0, %c0_i32 : i32, i32
  }
  func.func @transform_1(%arg0: i32) -> (i32, i32) {
    %c0_i32 = arith.constant 0 : i32
    %c0_i32_0 = arith.constant 0 : i32
    return %arg0, %c0_i32 : i32, i32
  }
  func.func @transform_2(%arg0: i32) -> (i32, i32) {
    %c0_i32 = arith.constant 0 : i32
    %c0_i32_0 = arith.constant 0 : i32
    %c0_i32_1 = arith.constant 0 : i32
    return %c0_i32, %c0_i32_0 : i32, i32
  }
  func.func @transform_3(%arg0: i32) -> (i32, i32) {
    %c0_i32 = arith.constant 0 : i32
    %c0_i32_0 = arith.constant 0 : i32
    %c0_i32_1 = arith.constant 0 : i32
    return %c0_i32, %c0_i32_0 : i32, i32
  }
  func.func @transform_4(%arg0: i32) -> (i32, i32) {
    %c0_i32 = arith.constant 0 : i32
    %c0_i32_0 = arith.constant 0 : i32
    %c0_i32_1 = arith.constant 0 : i32
    return %c0_i32, %c0_i32_0 : i32, i32
  }
  func.func @transform_5(%arg0: i32) -> (i32, i32) {
    %c0_i32 = arith.constant 0 : i32
    %c0_i32_0 = arith.constant 0 : i32
    %c0_i32_1 = arith.constant 0 : i32
    return %c0_i32, %c0_i32_0 : i32, i32
  }
  func.func @transform_6(%arg0: i32) -> (i32, i32) {
    %c0_i32 = arith.constant 0 : i32
    %c0_i32_0 = arith.constant 0 : i32
    return %arg0, %c0_i32 : i32, i32
  }
}

</mosaic_0001>

<llo_original>
// kernel: tpu_custom_call.1
$region0: #{tpu_custom_call.1}
  #allocation0 [shape = 'u32[]', space=smem, size = 0x4, offset = 0x4, fixed_abs, tag = 'smem constant byte address 0x4 - core index']
  #allocation1 [shape = 'u32[144,128]{1,0:T(1,128)}', space=vmem, size = 0x12000, scoped, tag = 'internal scratch']
  #allocation2 [shape = 'f32[16,128]{1,0:T(8,128)}', space=vmem, size = 0x2000, scoped, tag = 'scratch operand']
  #allocation3 [shape = 'f32[64,128]{1,0:T(8,128)}', space=vmem, size = 0x8000, scoped, tag = 'scratch operand']
  %s0 = inlined_call_operand.vmem [shape: bf16[256,128], index: 0, kind: input, shape index: {}]
  %s1 = inlined_call_operand.vmem [shape: f32[256,1], index: 1, kind: input, shape index: {}]
  %s2 = inlined_call_operand.vmem [shape: bf16[128,128], index: 2, kind: input, shape index: {}]
  %s3 = inlined_call_operand.vmem [shape: bf16[128,128], index: 3, kind: input, shape index: {}]
  %s4 = inlined_call_operand.vmem [shape: f32[1,128], index: 4, kind: input, shape index: {}]
  %s5 = inlined_call_operand.vmem [shape: f32[16,128], index: 5, kind: input, shape index: {}]
  %s6 = inlined_call_operand.hbm [shape: bf16[256,128], index: 6, kind: output, shape index: {}]
  %s7 = sld [smem:[#allocation0]]
  $region61: #{tpu_custom_call.1} parent=0
    _
  %s9 = ssub.s32 1, %s7
  %s10 = scalar_select 0, %s9, %s7
  $region1: #{tpu_custom_call.1} parent=0
    #allocation4 [shape = 'u8[32768]{0}', space=vmem, size = 0x8000, scoped, tag = 'output window, operand 0']
    #allocation5 [shape = 's32[2]{0}', space=sflag, size = 0x8, scoped, tag = 'scoped memory for tpu_custom_call.1']
    %11 = vsyncpa [#allocation5], 0
    %s12 = scalar_lea.sflag [#allocation5], 1
    %13 = vsyncpa %s12, 0
    loop: start=0, step=1, limit=6
    $region2: #{tpu_custom_call.1} parent=1 // loop_pre_header
      _
    $region3: #{tpu_custom_call.1} parent=1 // loop_header
      %s15 = sphi 0, %s19
      %p16 = scmp.ge.s32.totalorder %s15, 6
      %s25 = sphi 0, %s27
      %s28 = sphi 0, %s25
      %s29 = sphi 0, %s28
      %s45 = sphi 0, %s29
      %s51 = sphi 0, %s53
      %s54 = sphi 0, %s51
      %s55 = sphi 0, %s54
      %s71 = sphi 0, %s55
      %s75 = sphi 0, %s75
      %s77 = sphi 0, %s75
      %s78 = sphi 0, %s77
      %s92 = sphi 0, %s78
      %s96 = sphi 0, %s96
      %s98 = sphi 0, %s96
      %s99 = sphi 0, %s98
      %s113 = sphi 0, %s99
      %s117 = sphi 0, %s117
      %s119 = sphi 0, %s117
      %s120 = sphi 0, %s119
      %s134 = sphi 0, %s120
      %s138 = sphi 0, %s138
      %s140 = sphi 0, %s138
      %s141 = sphi 0, %s140
      %s155 = sphi 0, %s141
      %s161 = sphi 0, %s163
      %s164 = sphi 0, %s161
      %s165 = sphi 0, %s164
      %s181 = sphi 0, %s165
    $region4: #{tpu_custom_call.1} parent=1 // loop_header_branch
      %18 = sbr.rel (%p16) target = $region8
    $region5: #{tpu_custom_call.1} parent=1 // loop_body
      %s20 = ssub.s32 %s15, 1
      %s21 = ssub.s32 %s15, 2
      %s22 = sadd.s32 %s15, 1
      %s23 = ssub.s32 %s15, %s22
      %p24 = scmp.eq.s32.totalorder %s23, 0
      %s26 = sadd.s32 %s25, 1
      %s27 = scalar_select %p24, %s25, %s26
      %p30 = pneg %p24
      %p31 = scmp.eq.s32.totalorder %s15, 3
      %p32 = por %p30, %p31
      %p33 = scmp.ne.s32.totalorder %s25, %s28
      %p34 = scmp.eq.s32.totalorder %s15, 0
      %p35 = por %p33, %p34
      %p36 = scmp.ne.s32.totalorder %s25, %s28
      %p37 = scmp.eq.s32.totalorder %s20, 3
      %p38 = por %p36, %p37
      %p39 = scmp.ne.s32.totalorder %s28, %s29
      %p40 = scmp.eq.s32.totalorder %s20, 0
      %p41 = por %p39, %p40
      %p42 = scmp.ne.s32.totalorder %s28, %s29
      %p43 = scmp.eq.s32.totalorder %s21, 3
      %p44 = por %p42, %p43
      %p46 = scmp.ne.s32.totalorder %s29, %s45
      %p47 = scmp.eq.s32.totalorder %s21, 0
      %p48 = por %p46, %p47
      %s49 = ssub.s32 %s15, %s22
      %p50 = scmp.eq.s32.totalorder %s49, 0
      %s52 = sadd.s32 %s51, 1
      %s53 = scalar_select %p50, %s51, %s52
      %p56 = pneg %p50
      %p57 = scmp.eq.s32.totalorder %s15, 3
      %p58 = por %p56, %p57
      %p59 = scmp.ne.s32.totalorder %s51, %s54
      %p60 = scmp.eq.s32.totalorder %s15, 0
      %p61 = por %p59, %p60
      %p62 = scmp.ne.s32.totalorder %s51, %s54
      %p63 = scmp.eq.s32.totalorder %s20, 3
      %p64 = por %p62, %p63
      %p65 = scmp.ne.s32.totalorder %s54, %s55
      %p66 = scmp.eq.s32.totalorder %s20, 0
      %p67 = por %p65, %p66
      %p68 = scmp.ne.s32.totalorder %s54, %s55
      %p69 = scmp.eq.s32.totalorder %s21, 3
      %p70 = por %p68, %p69
      %p72 = scmp.ne.s32.totalorder %s55, %s71
      %p73 = scmp.eq.s32.totalorder %s21, 0
      %p74 = por %p72, %p73
      %s76 = sadd.s32 %s75, 1
      %p79 = scmp.eq.s32.totalorder %s15, 3
      %p80 = scmp.ne.s32.totalorder %s75, %s77
      %p81 = scmp.eq.s32.totalorder %s15, 0
      %p82 = por %p80, %p81
      %p83 = scmp.ne.s32.totalorder %s75, %s77
      %p84 = scmp.eq.s32.totalorder %s20, 3
      %p85 = por %p83, %p84
      %p86 = scmp.ne.s32.totalorder %s77, %s78
      %p87 = scmp.eq.s32.totalorder %s20, 0
      %p88 = por %p86, %p87
      %p89 = scmp.ne.s32.totalorder %s77, %s78
      %p90 = scmp.eq.s32.totalorder %s21, 3
      %p91 = por %p89, %p90
      %p93 = scmp.ne.s32.totalorder %s78, %s92
      %p94 = scmp.eq.s32.totalorder %s21, 0
      %p95 = por %p93, %p94
      %s97 = sadd.s32 %s96, 1
      %p100 = scmp.eq.s32.totalorder %s15, 3
      %p101 = scmp.ne.s32.totalorder %s96, %s98
      %p102 = scmp.eq.s32.totalorder %s15, 0
      %p103 = por %p101, %p102
      %p104 = scmp.ne.s32.totalorder %s96, %s98
      %p105 = scmp.eq.s32.totalorder %s20, 3
      %p106 = por %p104, %p105
      %p107 = scmp.ne.s32.totalorder %s98, %s99
      %p108 = scmp.eq.s32.totalorder %s20, 0
      %p109 = por %p107, %p108
      %p110 = scmp.ne.s32.totalorder %s98, %s99
      %p111 = scmp.eq.s32.totalorder %s21, 3
      %p112 = por %p110, %p111
      %p114 = scmp.ne.s32.totalorder %s99, %s113
      %p115 = scmp.eq.s32.totalorder %s21, 0
      %p116 = por %p114, %p115
      %s118 = sadd.s32 %s117, 1
      %p121 = scmp.eq.s32.totalorder %s15, 3
      %p122 = scmp.ne.s32.totalorder %s117, %s119
      %p123 = scmp.eq.s32.totalorder %s15, 0
      %p124 = por %p122, %p123
      %p125 = scmp.ne.s32.totalorder %s117, %s119
      %p126 = scmp.eq.s32.totalorder %s20, 3
      %p127 = por %p125, %p126
      %p128 = scmp.ne.s32.totalorder %s119, %s120
      %p129 = scmp.eq.s32.totalorder %s20, 0
      %p130 = por %p128, %p129
      %p131 = scmp.ne.s32.totalorder %s119, %s120
      %p132 = scmp.eq.s32.totalorder %s21, 3
      %p133 = por %p131, %p132
      %p135 = scmp.ne.s32.totalorder %s120, %s134
      %p136 = scmp.eq.s32.totalorder %s21, 0
      %p137 = por %p135, %p136
      %s139 = sadd.s32 %s138, 1
      %p142 = scmp.eq.s32.totalorder %s15, 3
      %p143 = scmp.ne.s32.totalorder %s138, %s140
      %p144 = scmp.eq.s32.totalorder %s15, 0
      %p145 = por %p143, %p144
      %p146 = scmp.ne.s32.totalorder %s138, %s140
      %p147 = scmp.eq.s32.totalorder %s20, 3
      %p148 = por %p146, %p147
      %p149 = scmp.ne.s32.totalorder %s140, %s141
      %p150 = scmp.eq.s32.totalorder %s20, 0
      %p151 = por %p149, %p150
      %p152 = scmp.ne.s32.totalorder %s140, %s141
      %p153 = scmp.eq.s32.totalorder %s21, 3
      %p154 = por %p152, %p153
      %p156 = scmp.ne.s32.totalorder %s141, %s155
      %p157 = scmp.eq.s32.totalorder %s21, 0
      %p158 = por %p156, %p157
      %s159 = ssub.s32 %s15, %s22
      %p160 = scmp.eq.s32.totalorder %s159, 0
      %s162 = sadd.s32 %s161, 1
      %s163 = scalar_select %p160, %s161, %s162
      %p166 = pneg %p160
      %p167 = scmp.eq.s32.totalorder %s15, 3
      %p168 = por %p166, %p167
      %p169 = scmp.ne.s32.totalorder %s161, %s164
      %p170 = scmp.eq.s32.totalorder %s15, 0
      %p171 = por %p169, %p170
      %p172 = scmp.ne.s32.totalorder %s161, %s164
      %p173 = scmp.eq.s32.totalorder %s20, 3
      %p174 = por %p172, %p173
      %p175 = scmp.ne.s32.totalorder %s164, %s165
      %p176 = scmp.eq.s32.totalorder %s20, 0
      %p177 = por %p175, %p176
      %p178 = scmp.ne.s32.totalorder %s164, %s165
      %p179 = scmp.eq.s32.totalorder %s21, 3
      %p180 = por %p178, %p179
      %p182 = scmp.ne.s32.totalorder %s165, %s181
      %p183 = scmp.eq.s32.totalorder %s21, 0
      %p184 = por %p182, %p183
      %p185 = scmp.le.s32.totalorder 1, %s15
      %p186 = scmp.lt.s32.totalorder %s15, 5
      %p187 = pnand %p185, %p186
      %p188 = pneg %p187
      // Predicated region
      $region9: #{tpu_custom_call.1} parent=5 // pred_check
        _
      $region10: #{tpu_custom_call.1} parent=5 // pred_check_branch
        %190 = sbr.rel (%p187) target = $region12
      $region11: #{tpu_custom_call.1} parent=5 // pred_region
        %s191 = ssub.s32 %s15, 1
        // Predicated region
        $region13: #{tpu_custom_call.1} parent=11 // pred_check
          %p192 = pneg %p88
        $region14: #{tpu_custom_call.1} parent=11 // pred_check_branch
          %194 = sbr.rel (%p192) target = $region16
        $region15: #{tpu_custom_call.1} parent=11 // pred_region
          _
        $region16: #{tpu_custom_call.1} parent=11 // pred_fallthru
          _
        // Predicated region
        $region17: #{tpu_custom_call.1} parent=11 // pred_check
          %p195 = pneg %p109
        $region18: #{tpu_custom_call.1} parent=11 // pred_check_branch
          %197 = sbr.rel (%p195) target = $region20
        $region19: #{tpu_custom_call.1} parent=11 // pred_region
          _
        $region20: #{tpu_custom_call.1} parent=11 // pred_fallthru
          _
        // Predicated region
        $region21: #{tpu_custom_call.1} parent=11 // pred_check
          %p198 = pneg %p130
        $region22: #{tpu_custom_call.1} parent=11 // pred_check_branch
          %200 = sbr.rel (%p198) target = $region24
        $region23: #{tpu_custom_call.1} parent=11 // pred_region
          _
        $region24: #{tpu_custom_call.1} parent=11 // pred_fallthru
          _
        // Predicated region
        $region25: #{tpu_custom_call.1} parent=11 // pred_check
          %p201 = pneg %p151
        $region26: #{tpu_custom_call.1} parent=11 // pred_check_branch
          %203 = sbr.rel (%p201) target = $region28
        $region27: #{tpu_custom_call.1} parent=11 // pred_region
          _
        $region28: #{tpu_custom_call.1} parent=11 // pred_fallthru
          _
      $region12: #{tpu_custom_call.1} parent=5 // pred_fallthru
        _
      %p204 = scmp.lt.s32.totalorder %s15, 4
      // Predicated region
      $region29: #{tpu_custom_call.1} parent=5 // pred_check
        %p205 = pneg %p204
      $region30: #{tpu_custom_call.1} parent=5 // pred_check_branch
        %207 = sbr.rel (%p205) target = $region32
      $region31: #{tpu_custom_call.1} parent=5 // pred_region
        // Predicated region
        $region33: #{tpu_custom_call.1} parent=31 // pred_check
          %p208 = pneg %p35
        $region34: #{tpu_custom_call.1} parent=31 // pred_check_branch
          %210 = sbr.rel (%p208) target = $region36
        $region35: #{tpu_custom_call.1} parent=31 // pred_region
          %s211 = smul.u32 8, %s15
          %p212 = scmp.lt.s32.totalorder %s211, 31
          %s213 = scalar_select %p212, %s211, 31
          %s214 = smul.addr %s213, 4
          %s215 = scalar_lea.vmem %s0, %s214
          %s216 = smul.u32 8, %s15
        $region36: #{tpu_custom_call.1} parent=31 // pred_fallthru
          _
        // Predicated region
        $region37: #{tpu_custom_call.1} parent=31 // pred_check
          %p217 = pneg %p61
        $region38: #{tpu_custom_call.1} parent=31 // pred_check_branch
          %219 = sbr.rel (%p217) target = $region40
        $region39: #{tpu_custom_call.1} parent=31 // pred_region
          %s220 = smul.u32 8, %s15
          %p221 = scmp.lt.s32.totalorder %s220, 31
          %s222 = scalar_select %p221, %s220, 31
          %s223 = smul.addr %s222, 8
          %s224 = scalar_lea.vmem %s1, %s223
          %s225 = smul.u32 8, %s15
        $region40: #{tpu_custom_call.1} parent=31 // pred_fallthru
          _
      $region32: #{tpu_custom_call.1} parent=5 // pred_fallthru
        _
      %p226 = scmp.le.s32.totalorder 1, %s15
      %p227 = scmp.lt.s32.totalorder %s15, 5
      %p228 = pnand %p226, %p227
      %p229 = pneg %p228
      // Predicated region
      $region41: #{tpu_custom_call.1} parent=5 // pred_check
        _
      $region42: #{tpu_custom_call.1} parent=5 // pred_check_branch
        %231 = sbr.rel (%p228) target = $region44
      $region43: #{tpu_custom_call.1} parent=5 // pred_region
        %s232 = ssub.s32 %s15, 1
        %s233 = smul.u32 8, %s20
        %p234 = scmp.lt.s32.totalorder %s233, 31
        %s235 = scalar_select %p234, %s233, 31
        %s236 = smul.addr %s235, 4
        %s237 = scalar_lea.vmem %s0, %s236
        %p238 = pneg %p41
        %p239 = pneg %p38
        %s240 = smul.u32 8, %s20
        %p241 = scmp.lt.s32.totalorder %s240, 31
        %s242 = scalar_select %p241, %s240, 31
        %s243 = smul.addr %s242, 8
        %s244 = scalar_lea.vmem %s1, %s243
        %p245 = pneg %p67
        %p246 = pneg %p64
        %p247 = pneg %p88
        %p248 = pneg %p85
        %p249 = pneg %p109
        %p250 = pneg %p106
        %p251 = pneg %p130
        %p252 = pneg %p127
        %p253 = pneg %p151
        %p254 = pneg %p148
        %p255 = pneg %p177
        %p256 = pneg %p174
        %s257 = sand.u32 %s164, 1
        %s258 = scalar_lea.sflag [#allocation5], %s257
        %s259 = sand.u32 %s164, 1
        %s260 = smul.addr %s259, 32
        %s261 = scalar_lea.vmem [#allocation4], %s260
        %s262 = smul.u32 8, %s20
        %p263 = scmp.lt.s32.totalorder %s262, 31
        %s264 = scalar_select %p263, %s262, 31
        %s265 = smul.addr %s264, 4
        %s266 = scalar_lea.vmem %s0, %s265
        %s267 = smul.u32 8, %s20
        %s268 = smul.u32 8, %s20
        %p269 = scmp.lt.s32.totalorder %s268, 31
        %s270 = scalar_select %p269, %s268, 31
        %s271 = smul.addr %s270, 8
        %s272 = scalar_lea.vmem %s1, %s271
        %s273 = smul.u32 8, %s20
        %s274 = smul.u32 8, %s20
        %p276 = scmp.eq.s32.totalorder %s20, 0
        // Predicated region
        $region45: #{tpu_custom_call.1} parent=43 // pred_check
          %p277 = pneg %p276
        $region46: #{tpu_custom_call.1} parent=43 // pred_check_branch
          %279 = sbr.rel (%p277) target = $region48
        $region47: #{tpu_custom_call.1} parent=43 // pred_region
          %v280 = vld [vmem:[%s5] sm:$0xff]
          %v281 = vld [vmem:[%s5 + $0x8] sm:$0xff]
          %282 = vst [vmem:[#allocation2] sm:$0xff] %v280
          %283 = vst [vmem:[#allocation2 + $0x8] sm:$0xff] %v281
        $region48: #{tpu_custom_call.1} parent=43 // pred_fallthru
          _
        %v284 = vld [vmem:[%s266] sm:$0xf]
        %v285 = vld [vmem:[%s266 + $0x4] sm:$0xf]
        %v286 = vld [vmem:[%s266 + $0x8] sm:$0xf]
        %v287 = vld [vmem:[%s266 + $0xc] sm:$0xf]
        %v288 = vld [vmem:[%s266 + $0x10] sm:$0xf]
        %v289 = vld [vmem:[%s266 + $0x14] sm:$0xf]
        %v290 = vld [vmem:[%s266 + $0x18] sm:$0xf]
        %v291 = vld [vmem:[%s266 + $0x1c] sm:$0xf]
        %v292 = vld [vmem:[%s2] sm:$0xf]
        %v293 = vld [vmem:[%s2 + $0x4] sm:$0xf]
        %v294 = vld [vmem:[%s2 + $0x8] sm:$0xf]
        %v295 = vld [vmem:[%s2 + $0xc] sm:$0xf]
        %v296 = vld [vmem:[%s2 + $0x10] sm:$0xf]
        %v297 = vld [vmem:[%s2 + $0x14] sm:$0xf]
        %v298 = vld [vmem:[%s2 + $0x18] sm:$0xf]
        %v299 = vld [vmem:[%s2 + $0x1c] sm:$0xf]
        %v300 = vld [vmem:[%s2 + $0x20] sm:$0xf]
        %v301 = vld [vmem:[%s2 + $0x24] sm:$0xf]
        %v302 = vld [vmem:[%s2 + $0x28] sm:$0xf]
        %v303 = vld [vmem:[%s2 + $0x2c] sm:$0xf]
        %v304 = vld [vmem:[%s2 + $0x30] sm:$0xf]
        %v305 = vld [vmem:[%s2 + $0x34] sm:$0xf]
        %v306 = vld [vmem:[%s2 + $0x38] sm:$0xf]
        %v307 = vld [vmem:[%s2 + $0x3c] sm:$0xf]
        %v308 = vld [vmem:[%s4] sm:$0x1]
        %v310 = vlaneseq
        %v311 = vshrl.u32 %v310, 7
        %v312 = vsub.s32 0, %v311
        %v313 = vrot.slane %v308, %v312
        %v323 = vunpack.c.l.b16 %v284
        %v324 = vunpack.c.l.b16 %v285
        %v325 = vunpack.c.l.b16 %v286
        %v326 = vunpack.c.l.b16 %v287
        %v327 = vunpack.c.l.b16 %v288
        %v328 = vunpack.c.l.b16 %v289
        %v329 = vunpack.c.l.b16 %v290
        %v330 = vunpack.c.l.b16 %v291
        %v331 = vpack.c.b16 %v324, %v323
        %v332 = vpack.c.b16 %v326, %v325
        %v333 = vpack.c.b16 %v328, %v327
        %v334 = vpack.c.b16 %v330, %v329
        %v355 = vunpack.c.l.b16 %v292
        %v356 = vunpack.c.l.b16 %v293
        %v357 = vunpack.c.l.b16 %v294
        %v358 = vunpack.c.l.b16 %v295
        %v359 = vunpack.c.l.b16 %v296
        %v360 = vunpack.c.l.b16 %v297
        %v361 = vunpack.c.l.b16 %v298
        %v362 = vunpack.c.l.b16 %v299
        %v363 = vunpack.c.l.b16 %v300
        %v364 = vunpack.c.l.b16 %v301
        %v365 = vunpack.c.l.b16 %v302
        %v366 = vunpack.c.l.b16 %v303
        %v367 = vunpack.c.l.b16 %v304
        %v368 = vunpack.c.l.b16 %v305
        %v369 = vunpack.c.l.b16 %v306
        %v370 = vunpack.c.l.b16 %v307
        %v371 = vpack.c.b16 %v356, %v355
        %v372 = vpack.c.b16 %v358, %v357
        %v373 = vpack.c.b16 %v360, %v359
        %v374 = vpack.c.b16 %v362, %v361
        %v375 = vpack.c.b16 %v364, %v363
        %v376 = vpack.c.b16 %v366, %v365
        %v377 = vpack.c.b16 %v368, %v367
        %v378 = vpack.c.b16 %v370, %v369
        %387 = vmatprep.subr.bf16.mxu0 0
        %388 = vmatpush1.bf16.msra.mxu0 %v371
        %389 = vmatprep.subr.bf16.mxu0 0
        %390 = vmatpush1.bf16.msra.mxu0 %v372
        %391 = vmatprep.subr.bf16.mxu0 0
        %392 = vmatpush1.bf16.msra.mxu0 %v373
        %393 = vmatprep.subr.bf16.mxu0 0
        %394 = vmatpush1.bf16.msra.mxu0 %v374
        %395 = vmatprep.subr.bf16.mxu0 0
        %396 = vmatpush1.bf16.msra.mxu0 %v375
        %397 = vmatprep.subr.bf16.mxu0 0
        %398 = vmatpush1.bf16.msra.mxu0 %v376
        %399 = vmatprep.subr.bf16.mxu0 0
        %400 = vmatpush1.bf16.msra.mxu0 %v377
        %401 = vmatprep.subr.bf16.mxu0 0
        %402 = vmatpush1.bf16.msra.mxu0 %v378
        %403 = vmatprep.subr.bf16.mxu0 0
        %404 = vmatpush1.bf16.msra.mxu0 0
        %405 = vmatprep.subr.bf16.mxu0 0
        %406 = vmatpush1.bf16.msra.mxu0 0
        %407 = vmatprep.subr.bf16.mxu0 0
        %408 = vmatpush1.bf16.msra.mxu0 0
        %409 = vmatprep.subr.bf16.mxu0 0
        %410 = vmatpush1.bf16.msra.mxu0 0
        %411 = vmatprep.subr.bf16.mxu0 0
        %412 = vmatpush1.bf16.msra.mxu0 0
        %413 = vmatprep.subr.bf16.mxu0 0
        %414 = vmatpush1.bf16.msra.mxu0 0
        %415 = vmatprep.subr.bf16.mxu0 0
        %416 = vmatpush1.bf16.msra.mxu0 0
        %417 = vmatprep.subr.bf16.mxu0 0
        %418 = vmatpush1.bf16.msra.mxu0 0
        %419 = vmatprep.mubr.bf16.mxu0 0
        %420 = vmatmul.mubr.bf16.gmra.mrb[0].mxu0 %v331
        %v421 = vpop.f32.mrb[0].mxu0
        %v422 = vadd.f32 %v313, %v421
        %v423 = vpop.f32.mrb[0].mxu0
        %v424 = vpop.f32.mrb[0].mxu0
        %v425 = vadd.f32 %v313, %v424
        %v426 = vpop.f32.mrb[0].mxu0
        %427 = vmatprep.mubr.bf16.mxu0 0
        %428 = vmatmul.mubr.bf16.gmra.mrb[0].mxu0 %v332
        %v429 = vpop.f32.mrb[0].mxu0
        %v430 = vadd.f32 %v313, %v429
        %v431 = vpop.f32.mrb[0].mxu0
        %v432 = vpop.f32.mrb[0].mxu0
        %v433 = vadd.f32 %v313, %v432
        %v434 = vpop.f32.mrb[0].mxu0
        %435 = vmatprep.mubr.bf16.mxu0 0
        %436 = vmatmul.mubr.bf16.gmra.mrb[0].mxu0 %v333
        %v437 = vpop.f32.mrb[0].mxu0
        %v438 = vadd.f32 %v313, %v437
        %v439 = vpop.f32.mrb[0].mxu0
        %v440 = vpop.f32.mrb[0].mxu0
        %v441 = vadd.f32 %v313, %v440
        %v442 = vpop.f32.mrb[0].mxu0
        %443 = vmatprep.mubr.bf16.mxu0 0
        %444 = vmatmul.mubr.bf16.gmra.mrb[0].mxu0 %v334
        %v445 = vpop.f32.mrb[0].mxu0
        %v446 = vadd.f32 %v313, %v445
        %v447 = vpop.f32.mrb[0].mxu0
        %v448 = vpop.f32.mrb[0].mxu0
        %v449 = vadd.f32 %v313, %v448
        %v450 = vpop.f32.mrb[0].mxu0
        %451 = vdwg.mxu0
        %452 = vst [vmem:[#allocation3] sm:$0xff] %v422
        %453 = vst [vmem:[#allocation3 + $0x8] sm:$0xff] %v425
        %454 = vst [vmem:[#allocation3 + $0x10] sm:$0xff] %v430
        %455 = vst [vmem:[#allocation3 + $0x18] sm:$0xff] %v433
        %456 = vst [vmem:[#allocation3 + $0x20] sm:$0xff] %v438
        %457 = vst [vmem:[#allocation3 + $0x28] sm:$0xff] %v441
        %458 = vst [vmem:[#allocation3 + $0x30] sm:$0xff] %v446
        %459 = vst [vmem:[#allocation3 + $0x38] sm:$0xff] %v449
        %v460 = vld [vmem:[%s3] sm:$0xf]
        %v461 = vld [vmem:[%s3 + $0x4] sm:$0xf]
        %v462 = vld [vmem:[%s3 + $0x8] sm:$0xf]
        %v463 = vld [vmem:[%s3 + $0xc] sm:$0xf]
        %v464 = vld [vmem:[%s3 + $0x10] sm:$0xf]
        %v465 = vld [vmem:[%s3 + $0x14] sm:$0xf]
        %v466 = vld [vmem:[%s3 + $0x18] sm:$0xf]
        %v467 = vld [vmem:[%s3 + $0x1c] sm:$0xf]
        %v468 = vld [vmem:[%s3 + $0x20] sm:$0xf]
        %v469 = vld [vmem:[%s3 + $0x24] sm:$0xf]
        %v470 = vld [vmem:[%s3 + $0x28] sm:$0xf]
        %v471 = vld [vmem:[%s3 + $0x2c] sm:$0xf]
        %v472 = vld [vmem:[%s3 + $0x30] sm:$0xf]
        %v473 = vld [vmem:[%s3 + $0x34] sm:$0xf]
        %v474 = vld [vmem:[%s3 + $0x38] sm:$0xf]
        %v475 = vld [vmem:[%s3 + $0x3c] sm:$0xf]
        %v476 = vld [vmem:[#allocation2] sm:$0xff]
        %v477 = vld [vmem:[#allocation2 + $0x8] sm:$0xff]
        %v478 = vld [vmem:[%s272] sm:$0xff]
        %v479 = vld [vmem:[%s272 + $0x8] sm:$0xff]
        %v480 = vsub.f32 1.0, %v478
        %v481 = vsub.f32 1.0, %v479
        %483 = vset.pattern.permute.xlu0 0
        %484 = vperm.xlu0 %483, %v480
        %v485 = vpop.permute.xlu0 %484
        %488 = vset.pattern.permute.xlu0 0
        %489 = vperm.xlu0 %488, %v481
        %v490 = vpop.permute.xlu0 %489
        %v492 = vmul.f32 %v476, %v485
        %v493 = vmul.f32 %v477, %v490
        %v494 = vpack.c.bf16 %v493, %v492
        %v495 = vld [vmem:[#allocation3] sm:$0xff]
        %v496 = vld [vmem:[#allocation3 + $0x8] sm:$0xff]
        %v513 = vunpack.c.l.b16 %v460
        %v514 = vunpack.c.l.b16 %v461
        %v515 = vunpack.c.l.b16 %v462
        %v516 = vunpack.c.l.b16 %v463
        %v517 = vunpack.c.l.b16 %v464
        %v518 = vunpack.c.l.b16 %v465
        %v519 = vunpack.c.l.b16 %v466
        %v520 = vunpack.c.l.b16 %v467
        %v521 = vunpack.c.l.b16 %v468
        %v522 = vunpack.c.l.b16 %v469
        %v523 = vunpack.c.l.b16 %v470
        %v524 = vunpack.c.l.b16 %v471
        %v525 = vunpack.c.l.b16 %v472
        %v526 = vunpack.c.l.b16 %v473
        %v527 = vunpack.c.l.b16 %v474
        %v528 = vunpack.c.l.b16 %v475
        %v529 = vpack.c.b16 %v514, %v513
        %v530 = vpack.c.b16 %v516, %v515
        %v531 = vpack.c.b16 %v518, %v517
        %v532 = vpack.c.b16 %v520, %v519
        %v533 = vpack.c.b16 %v522, %v521
        %v534 = vpack.c.b16 %v524, %v523
        %v535 = vpack.c.b16 %v526, %v525
        %v536 = vpack.c.b16 %v528, %v527
        %545 = vmatprep.subr.bf16.mxu0 0
        %546 = vmatpush1.bf16.msra.mxu0 %v529
        %547 = vmatprep.subr.bf16.mxu0 0
        %548 = vmatpush1.bf16.msra.mxu0 %v530
        %549 = vmatprep.subr.bf16.mxu0 0
        %550 = vmatpush1.bf16.msra.mxu0 %v531
        %551 = vmatprep.subr.bf16.mxu0 0
        %552 = vmatpush1.bf16.msra.mxu0 %v532
        %553 = vmatprep.subr.bf16.mxu0 0
        %554 = vmatpush1.bf16.msra.mxu0 %v533
        %555 = vmatprep.subr.bf16.mxu0 0
        %556 = vmatpush1.bf16.msra.mxu0 %v534
        %557 = vmatprep.subr.bf16.mxu0 0
        %558 = vmatpush1.bf16.msra.mxu0 %v535
        %559 = vmatprep.subr.bf16.mxu0 0
        %560 = vmatpush1.bf16.msra.mxu0 %v536
        %561 = vmatprep.subr.bf16.mxu0 0
        %562 = vmatpush1.bf16.msra.mxu0 0
        %563 = vmatprep.subr.bf16.mxu0 0
        %564 = vmatpush1.bf16.msra.mxu0 0
        %565 = vmatprep.subr.bf16.mxu0 0
        %566 = vmatpush1.bf16.msra.mxu0 0
        %567 = vmatprep.subr.bf16.mxu0 0
        %568 = vmatpush1.bf16.msra.mxu0 0
        %569 = vmatprep.subr.bf16.mxu0 0
        %570 = vmatpush1.bf16.msra.mxu0 0
        %571 = vmatprep.subr.bf16.mxu0 0
        %572 = vmatpush1.bf16.msra.mxu0 0
        %573 = vmatprep.subr.bf16.mxu0 0
        %574 = vmatpush1.bf16.msra.mxu0 0
        %575 = vmatprep.subr.bf16.mxu0 0
        %576 = vmatpush1.bf16.msra.mxu0 0
        %577 = vmatprep.mubr.bf16.mxu0 0
        %578 = vmatmul.mubr.bf16.gmra.mrb[0].mxu0 %v494
        %v579 = vpop.f32.mrb[0].mxu0
        %v580 = vadd.f32 %v495, %v579
        %v581 = vpop.f32.mrb[0].mxu0
        %v582 = vpop.f32.mrb[0].mxu0
        %v583 = vadd.f32 %v496, %v582
        %v584 = vpop.f32.mrb[0].mxu0
        %585 = vdwg.mxu0
        %v586 = vtanh.pop %v580
        %v587 = vtanh.pop %v583
        %v588 = vpack.c.bf16 %v587, %v586
        %v590 = vunpack.c.l.b16 %v588
        %v591 = vunpack.c.h.b16 %v588
        %v592 = vpack.c.b16 %v590, %v590
        %v593 = vpack.c.b16 %v591, %v591
        %596 = vst [vmem:[%s261] sm:$0xf] %v592
        %597 = vst [vmem:[%s261 + $0x4] sm:$0xf] %v593
        %v598 = vld [vmem:[%s272 + $0x10] sm:$0xff]
        %v599 = vld [vmem:[%s272 + $0x18] sm:$0xff]
        %v600 = vsub.f32 1.0, %v598
        %v601 = vsub.f32 1.0, %v599
        %603 = vset.pattern.permute.xlu0 0
        %604 = vperm.xlu0 %603, %v600
        %v605 = vpop.permute.xlu0 %604
        %608 = vset.pattern.permute.xlu0 0
        %609 = vperm.xlu0 %608, %v601
        %v610 = vpop.permute.xlu0 %609
        %v612 = vmul.f32 %v586, %v605
        %v613 = vmul.f32 %v587, %v610
        %v614 = vpack.c.bf16 %v613, %v612
        %v615 = vld [vmem:[#allocation3 + $0x10] sm:$0xff]
        %v616 = vld [vmem:[#allocation3 + $0x18] sm:$0xff]
        %617 = vmatprep.subr.bf16.mxu0 0
        %618 = vmatpush1.bf16.msra.mxu0 %v529
        %619 = vmatprep.subr.bf16.mxu0 0
        %620 = vmatpush1.bf16.msra.mxu0 %v530
        %621 = vmatprep.subr.bf16.mxu0 0
        %622 = vmatpush1.bf16.msra.mxu0 %v531
        %623 = vmatprep.subr.bf16.mxu0 0
        %624 = vmatpush1.bf16.msra.mxu0 %v532
        %625 = vmatprep.subr.bf16.mxu0 0
        %626 = vmatpush1.bf16.msra.mxu0 %v533
        %627 = vmatprep.subr.bf16.mxu0 0
        %628 = vmatpush1.bf16.msra.mxu0 %v534
        %629 = vmatprep.subr.bf16.mxu0 0
        %630 = vmatpush1.bf16.msra.mxu0 %v535
        %631 = vmatprep.subr.bf16.mxu0 0
        %632 = vmatpush1.bf16.msra.mxu0 %v536
        %633 = vmatprep.subr.bf16.mxu0 0
        %634 = vmatpush1.bf16.msra.mxu0 0
        %635 = vmatprep.subr.bf16.mxu0 0
        %636 = vmatpush1.bf16.msra.mxu0 0
        %637 = vmatprep.subr.bf16.mxu0 0
        %638 = vmatpush1.bf16.msra.mxu0 0
        %639 = vmatprep.subr.bf16.mxu0 0
        %640 = vmatpush1.bf16.msra.mxu0 0
        %641 = vmatprep.subr.bf16.mxu0 0
        %642 = vmatpush1.bf16.msra.mxu0 0
        %643 = vmatprep.subr.bf16.mxu0 0
        %644 = vmatpush1.bf16.msra.mxu0 0
        %645 = vmatprep.subr.bf16.mxu0 0
        %646 = vmatpush1.bf16.msra.mxu0 0
        %647 = vmatprep.subr.bf16.mxu0 0
        %648 = vmatpush1.bf16.msra.mxu0 0
        %649 = vmatprep.mubr.bf16.mxu0 0
        %650 = vmatmul.mubr.bf16.gmra.mrb[0].mxu0 %v614
        %v651 = vpop.f32.mrb[0].mxu0
        %v652 = vadd.f32 %v615, %v651
        %v653 = vpop.f32.mrb[0].mxu0
        %v654 = vpop.f32.mrb[0].mxu0
        %v655 = vadd.f32 %v616, %v654
        %v656 = vpop.f32.mrb[0].mxu0
        %657 = vdwg.mxu0
        %v658 = vtanh.pop %v652
        %v659 = vtanh.pop %v655
        %v660 = vpack.c.bf16 %v659, %v658
        %v662 = vunpack.c.l.b16 %v660
        %v663 = vunpack.c.h.b16 %v660
        %v664 = vpack.c.b16 %v662, %v662
        %v665 = vpack.c.b16 %v663, %v663
        %668 = vst [vmem:[%s261 + $0x8] sm:$0xf] %v664
        %669 = vst [vmem:[%s261 + $0xc] sm:$0xf] %v665
        %v670 = vld [vmem:[%s272 + $0x20] sm:$0xff]
        %v671 = vld [vmem:[%s272 + $0x28] sm:$0xff]
        %v672 = vsub.f32 1.0, %v670
        %v673 = vsub.f32 1.0, %v671
        %675 = vset.pattern.permute.xlu0 0
        %676 = vperm.xlu0 %675, %v672
        %v677 = vpop.permute.xlu0 %676
        %680 = vset.pattern.permute.xlu0 0
        %681 = vperm.xlu0 %680, %v673
        %v682 = vpop.permute.xlu0 %681
        %v684 = vmul.f32 %v658, %v677
        %v685 = vmul.f32 %v659, %v682
        %v686 = vpack.c.bf16 %v685, %v684
        %v687 = vld [vmem:[#allocation3 + $0x20] sm:$0xff]
        %v688 = vld [vmem:[#allocation3 + $0x28] sm:$0xff]
        %689 = vmatprep.subr.bf16.mxu0 0
        %690 = vmatpush1.bf16.msra.mxu0 %v529
        %691 = vmatprep.subr.bf16.mxu0 0
        %692 = vmatpush1.bf16.msra.mxu0 %v530
        %693 = vmatprep.subr.bf16.mxu0 0
        %694 = vmatpush1.bf16.msra.mxu0 %v531
        %695 = vmatprep.subr.bf16.mxu0 0
        %696 = vmatpush1.bf16.msra.mxu0 %v532
        %697 = vmatprep.subr.bf16.mxu0 0
        %698 = vmatpush1.bf16.msra.mxu0 %v533
        %699 = vmatprep.subr.bf16.mxu0 0
        %700 = vmatpush1.bf16.msra.mxu0 %v534
        %701 = vmatprep.subr.bf16.mxu0 0
        %702 = vmatpush1.bf16.msra.mxu0 %v535
        %703 = vmatprep.subr.bf16.mxu0 0
        %704 = vmatpush1.bf16.msra.mxu0 %v536
        %705 = vmatprep.subr.bf16.mxu0 0
        %706 = vmatpush1.bf16.msra.mxu0 0
        %707 = vmatprep.subr.bf16.mxu0 0
        %708 = vmatpush1.bf16.msra.mxu0 0
        %709 = vmatprep.subr.bf16.mxu0 0
        %710 = vmatpush1.bf16.msra.mxu0 0
        %711 = vmatprep.subr.bf16.mxu0 0
        %712 = vmatpush1.bf16.msra.mxu0 0
        %713 = vmatprep.subr.bf16.mxu0 0
        %714 = vmatpush1.bf16.msra.mxu0 0
        %715 = vmatprep.subr.bf16.mxu0 0
        %716 = vmatpush1.bf16.msra.mxu0 0
        %717 = vmatprep.subr.bf16.mxu0 0
        %718 = vmatpush1.bf16.msra.mxu0 0
        %719 = vmatprep.subr.bf16.mxu0 0
        %720 = vmatpush1.bf16.msra.mxu0 0
        %721 = vmatprep.mubr.bf16.mxu0 0
        %722 = vmatmul.mubr.bf16.gmra.mrb[0].mxu0 %v686
        %v723 = vpop.f32.mrb[0].mxu0
        %v724 = vadd.f32 %v687, %v723
        %v725 = vpop.f32.mrb[0].mxu0
        %v726 = vpop.f32.mrb[0].mxu0
        %v727 = vadd.f32 %v688, %v726
        %v728 = vpop.f32.mrb[0].mxu0
        %729 = vdwg.mxu0
        %v730 = vtanh.pop %v724
        %v731 = vtanh.pop %v727
        %v732 = vpack.c.bf16 %v731, %v730
        %v734 = vunpack.c.l.b16 %v732
        %v735 = vunpack.c.h.b16 %v732
        %v736 = vpack.c.b16 %v734, %v734
        %v737 = vpack.c.b16 %v735, %v735
        %740 = vst [vmem:[%s261 + $0x10] sm:$0xf] %v736
        %741 = vst [vmem:[%s261 + $0x14] sm:$0xf] %v737
        %v742 = vld [vmem:[%s272 + $0x30] sm:$0xff]
        %v743 = vld [vmem:[%s272 + $0x38] sm:$0xff]
        %v744 = vsub.f32 1.0, %v742
        %v745 = vsub.f32 1.0, %v743
        %747 = vset.pattern.permute.xlu0 0
        %748 = vperm.xlu0 %747, %v744
        %v749 = vpop.permute.xlu0 %748
        %752 = vset.pattern.permute.xlu0 0
        %753 = vperm.xlu0 %752, %v745
        %v754 = vpop.permute.xlu0 %753
        %v756 = vmul.f32 %v730, %v749
        %v757 = vmul.f32 %v731, %v754
        %v758 = vpack.c.bf16 %v757, %v756
        %v759 = vld [vmem:[#allocation3 + $0x30] sm:$0xff]
        %v760 = vld [vmem:[#allocation3 + $0x38] sm:$0xff]
        %761 = vmatprep.subr.bf16.mxu0 0
        %762 = vmatpush1.bf16.msra.mxu0 %v529
        %763 = vmatprep.subr.bf16.mxu0 0
        %764 = vmatpush1.bf16.msra.mxu0 %v530
        %765 = vmatprep.subr.bf16.mxu0 0
        %766 = vmatpush1.bf16.msra.mxu0 %v531
        %767 = vmatprep.subr.bf16.mxu0 0
        %768 = vmatpush1.bf16.msra.mxu0 %v532
        %769 = vmatprep.subr.bf16.mxu0 0
        %770 = vmatpush1.bf16.msra.mxu0 %v533
        %771 = vmatprep.subr.bf16.mxu0 0
        %772 = vmatpush1.bf16.msra.mxu0 %v534
        %773 = vmatprep.subr.bf16.mxu0 0
        %774 = vmatpush1.bf16.msra.mxu0 %v535
        %775 = vmatprep.subr.bf16.mxu0 0
        %776 = vmatpush1.bf16.msra.mxu0 %v536
        %777 = vmatprep.subr.bf16.mxu0 0
        %778 = vmatpush1.bf16.msra.mxu0 0
        %779 = vmatprep.subr.bf16.mxu0 0
        %780 = vmatpush1.bf16.msra.mxu0 0
        %781 = vmatprep.subr.bf16.mxu0 0
        %782 = vmatpush1.bf16.msra.mxu0 0
        %783 = vmatprep.subr.bf16.mxu0 0
        %784 = vmatpush1.bf16.msra.mxu0 0
        %785 = vmatprep.subr.bf16.mxu0 0
        %786 = vmatpush1.bf16.msra.mxu0 0
        %787 = vmatprep.subr.bf16.mxu0 0
        %788 = vmatpush1.bf16.msra.mxu0 0
        %789 = vmatprep.subr.bf16.mxu0 0
        %790 = vmatpush1.bf16.msra.mxu0 0
        %791 = vmatprep.subr.bf16.mxu0 0
        %792 = vmatpush1.bf16.msra.mxu0 0
        %793 = vmatprep.mubr.bf16.mxu0 0
        %794 = vmatmul.mubr.bf16.gmra.mrb[0].mxu0 %v758
        %v795 = vpop.f32.mrb[0].mxu0
        %v796 = vadd.f32 %v759, %v795
        %v797 = vpop.f32.mrb[0].mxu0
        %v798 = vpop.f32.mrb[0].mxu0
        %v799 = vadd.f32 %v760, %v798
        %v800 = vpop.f32.mrb[0].mxu0
        %801 = vdwg.mxu0
        %v802 = vtanh.pop %v796
        %v803 = vtanh.pop %v799
        %v804 = vpack.c.bf16 %v803, %v802
        %v806 = vunpack.c.l.b16 %v804
        %v807 = vunpack.c.h.b16 %v804
        %v808 = vpack.c.b16 %v806, %v806
        %v809 = vpack.c.b16 %v807, %v807
        %812 = vst [vmem:[%s261 + $0x18] sm:$0xf] %v808
        %813 = vst [vmem:[%s261 + $0x1c] sm:$0xf] %v809
        %814 = vst [vmem:[#allocation2] sm:$0xff] %v802
        %815 = vst [vmem:[#allocation2 + $0x8] sm:$0xff] %v803
        %s816 = sand.u32 %s164, 1
        %s817 = scalar_lea.sflag [#allocation5], %s816
        %s818 = sand.u32 %s164, 1
        %s819 = smul.addr %s818, 32
        %s820 = scalar_lea.vmem [#allocation4], %s819
        // Predicated region
        $region49: #{tpu_custom_call.1} parent=43 // pred_check
          %p821 = pneg %p174
        $region50: #{tpu_custom_call.1} parent=43 // pred_check_branch
          %823 = sbr.rel (%p821) target = $region52
        $region51: #{tpu_custom_call.1} parent=43 // pred_region
          %s824 = smul.u32 8, %s20
          %s826 = ssub.s32 512, 512
          %827 = vsyncadd %s817, %s826
          %s828 = smul.addr %s824, 64
          %s829 = scalar_lea.hbm %s6, %s828
          %s830 = sshll.u32 %s820, 4
          %s831 = int_to_ptr.vmem [resolvable:$true] %s830
          %836 = dma.vmem_to_hbm [thread:$0]  %s831, 512, %s829, %s817, 64, 64, 4
        $region52: #{tpu_custom_call.1} parent=43 // pred_fallthru
          _
      $region44: #{tpu_custom_call.1} parent=5 // pred_fallthru
        _
      %p837 = scmp.le.s32.totalorder 2, %s15
      // Predicated region
      $region53: #{tpu_custom_call.1} parent=5 // pred_check
        %p838 = pneg %p837
      $region54: #{tpu_custom_call.1} parent=5 // pred_check_branch
        %840 = sbr.rel (%p838) target = $region56
      $region55: #{tpu_custom_call.1} parent=5 // pred_region
        %s841 = ssub.s32 %s15, 2
        // Predicated region
        $region57: #{tpu_custom_call.1} parent=55 // pred_check
          %p842 = pneg %p180
        $region58: #{tpu_custom_call.1} parent=55 // pred_check_branch
          %844 = sbr.rel (%p842) target = $region60
        $region59: #{tpu_custom_call.1} parent=55 // pred_region
          %s845 = sand.u32 %s165, 1
          %s846 = scalar_lea.sflag [#allocation5], %s845
          %s847 = sand.u32 %s165, 1
          %s848 = smul.addr %s847, 32
          %s849 = scalar_lea.vmem [#allocation4], %s848
          %850 = dma.done %s846, 512
        $region60: #{tpu_custom_call.1} parent=55 // pred_fallthru
          _
      $region56: #{tpu_custom_call.1} parent=5 // pred_fallthru
        _
    $region6: #{tpu_custom_call.1} parent=1 // loop_footer
      %s19 = sadd.s32 1, %s15
    $region7: #{tpu_custom_call.1} parent=1 // loop_footer_branch
      %14 = sbr.rel target = $region3
    $region8: #{tpu_custom_call.1} parent=1 // loop_exit
      _
    %851 = vsyncpa [#allocation5], 1
    %s852 = scalar_lea.sflag [#allocation5], 1
    %853 = vsyncpa %s852, 1

</llo_original>
